<compile_context>
chip_gen: v6e
topology: v6e:2x2x1
jax: 0.10.0
libtpu: 0.0.40
codegen_flags: <defaults>
</compile_context>

<pallas_src>
import functools

import jax
import jax.numpy as jnp
from jax.experimental import pallas as pl
from jax.experimental.pallas import tpu as pltpu

_LANE = 1024        # lane-dense last dim (multiple of 128 -> unmasked vector stores)
_ROW_TILE = 1024    # 1024 x 1024 x 4B = 4 MiB f32 block


def _snp_kernel(seed_ref, lat_ref, x_ref, o_ref, *, threshold, block_rows, lanes):
    # Global element offset of this block (scalar-unit math; wraps mod 2^32 by design).
    i = pl.program_id(0)
    base = jnp.uint32(block_rows * lanes) * i.astype(jnp.uint32)
    offset = base * jnp.uint32(0x9E3779B1) + seed_ref[0].astype(jnp.uint32)

    # Counter-based hash: resident lattice already holds (row*lanes + col) * 0x9E3779B1,
    # so per element we only add the scalar offset, then run murmur3 fmix32 (pure VPU).
    h = lat_ref[...] + offset
    h = h ^ (h >> 16)
    h = h * jnp.uint32(0x85EBCA6B)
    h = h ^ (h >> 13)
    h = h * jnp.uint32(0xC2B2AE35)
    h = h ^ (h >> 16)

    # Zero an element with probability `prob` == threshold / 2^32 (keep iff h >= thr).
    keep = h >= jnp.uint32(threshold)
    xv = x_ref[...]
    o_ref[...] = jnp.where(keep, xv, jnp.zeros_like(xv))


def salt_and_pepper_noise(x, seed, prob=0.005, row_tile=_ROW_TILE):
    """Apply salt-and-pepper (dropout-to-zero) noise to x (any shape, e.g. NCHW)."""
    orig_shape = x.shape
    n = x.size

    rows = pl.cdiv(n, _LANE)
    if rows >= row_tile:
        tr = row_tile
        assert tr % 8 == 0, "row tile must respect the (8, 128) sublane constraint"
    else:
        tr = rows  # single block spanning the full (rows) extent
    grid = pl.cdiv(rows, tr)  # last block may overhang; Pallas masks OOB writes

    # Pad only up to the next lane multiple (<= 1023 elements), and only when needed.
    flat = x.reshape(-1)
    lane_pad = rows * _LANE - n
    if lane_pad:
        flat = jnp.pad(flat, (0, lane_pad))
    x2 = flat.reshape(rows, _LANE)

    # Grid-invariant hash lattice, DMA'd once per core and kept VMEM-resident.
    lattice = (
        jnp.arange(tr * _LANE, dtype=jnp.uint32).reshape(tr, _LANE)
        * jnp.uint32(0x9E3779B1)
    )

    seed = int(seed) & 0xFFFFFFFF
    if seed >= 2**31:
        seed -= 2**32
    seed_arr = jnp.asarray([seed], dtype=jnp.int32)
    threshold = min(max(int(round(float(prob) * 2**32)), 0), 2**32 - 1)

    out2 = pl.pallas_call(
        functools.partial(
            _snp_kernel, threshold=threshold, block_rows=tr, lanes=_LANE
        ),
        out_shape=jax.ShapeDtypeStruct(x2.shape, x2.dtype),
        grid_spec=pltpu.PrefetchScalarGridSpec(
            num_scalar_prefetch=1,                                   # seed in SMEM
            grid=(grid,),
            in_specs=[
                pl.BlockSpec((tr, _LANE), lambda i, seed: (0, 0)),   # lattice (resident)
                pl.BlockSpec((tr, _LANE), lambda i, seed: (i, 0)),   # x tiles
            ],
            out_specs=pl.BlockSpec((tr, _LANE), lambda i, seed: (i, 0)),
        ),
        compiler_params=pltpu.CompilerParams(
            dimension_semantics=("parallel",),   # independent row tiles (megacore/v7x)
            vmem_limit_bytes=32 * 1024 * 1024,
        ),
    )(seed_arr, lattice, x2)

    out = out2.reshape(-1)
    if lane_pad:
        out = out[:n]
    return out.reshape(orig_shape)


if __name__ == "__main__":
    key = jax.random.PRNGKey(0)
    # Small NCHW image batch consistent with the module's intended use.
    x = jax.random.normal(key, (2, 4, 16, 16), dtype=jnp.float32)

    # Use a larger prob at this tiny size so the noise is actually observable.
    prob = 0.1
    out = salt_and_pepper_noise(x, seed=1234, prob=prob)
    out = jax.block_until_ready(out)

    # Semantics check: every output element is either the input value or exactly 0.
    same = out == x
    zeroed = out == 0.0
    assert bool(jnp.all(same | zeroed)), "output must be x or 0 elementwise"
    assert out.shape == x.shape and out.dtype == x.dtype

    # Loose statistical sanity check on the zeroing rate (2048 elems, p=0.1).
    frac_zero = float(jnp.mean(zeroed.astype(jnp.float32)))
    assert 0.0 < frac_zero < 0.5, f"unexpected zeroing fraction {frac_zero}"

    # Exercise the ragged-grid path (rows=12 not a multiple of row_tile=8).
    x_rag = jax.random.normal(jax.random.PRNGKey(1), (2, 4, 16, 96), dtype=jnp.float32)
    out_rag = jax.block_until_ready(
        salt_and_pepper_noise(x_rag, seed=7, prob=prob, row_tile=8)
    )
    assert out_rag.shape == x_rag.shape
    assert bool(jnp.all((out_rag == x_rag) | (out_rag == 0.0)))

    # Exercise the lane-pad path (size not a multiple of 1024).
    x_odd = jax.random.normal(jax.random.PRNGKey(2), (3, 5, 7, 11), dtype=jnp.float32)
    out_odd = jax.block_until_ready(salt_and_pepper_noise(x_odd, seed=99, prob=prob))
    assert out_odd.shape == x_odd.shape
    assert bool(jnp.all((out_odd == x_odd) | (out_odd == 0.0)))

    print("KERNEL_OK")
</pallas_src>

<mosaic_0001>
module attributes {stable_mosaic.version = 11 : i64} {
  func.func @_snp_kernel(%arg0: i32, %arg1: memref<1xi32, #tpu.memory_space<smem>>, %arg2: memref<2x1024xi32, #tpu.memory_space<vmem>>, %arg3: memref<2x1024xf32, #tpu.memory_space<vmem>>, %arg4: memref<2x1024xf32, #tpu.memory_space<vmem>>) attributes {dimension_semantics = [#tpu.dimension_semantics<parallel>], iteration_bounds = array<i64: 1>, scalar_prefetch = 1 : i64, scratch_operands = 0 : i64, tpu.core_type = #tpu.core_type<tc>, window_params = [{pipeline_mode = #tpu.pipeline_mode<synchronous>, transform_indices = @transform_0, window_bounds = array<i64: 2, 1024>}, {transform_indices = @transform_1, window_bounds = array<i64: 2, 1024>}, {transform_indices = @transform_2, window_bounds = array<i64: 2, 1024>}]} {
    %c2048_i32 = arith.constant 2048 : i32
    %0 = arith.muli %c2048_i32, %arg0 : i32
    %c-1640531535_i32 = arith.constant -1640531535 : i32
    %1 = arith.muli %0, %c-1640531535_i32 : i32
    %c0 = arith.constant 0 : index
    %2 = memref.load %arg1[%c0] : memref<1xi32, #tpu.memory_space<smem>>
    %3 = arith.addi %1, %2 : i32
    %c0_0 = arith.constant 0 : index
    %c0_1 = arith.constant 0 : index
    %4 = vector.load %arg2[%c0_0, %c0_1] : memref<2x1024xi32, #tpu.memory_space<vmem>>, vector<2x1024xi32>
    %5 = vector.broadcast %3 : i32 to vector<2x1024xi32>
    %6 = arith.addi %4, %5 : vector<2x1024xi32>
    %c16_i32 = arith.constant 16 : i32
    %7 = vector.broadcast %c16_i32 : i32 to vector<2x1024xi32>
    %8 = arith.shrui %6, %7 : vector<2x1024xi32>
    %9 = arith.xori %6, %8 : vector<2x1024xi32>
    %c-2048144789_i32 = arith.constant -2048144789 : i32
    %10 = vector.broadcast %c-2048144789_i32 : i32 to vector<2x1024xi32>
    %11 = arith.muli %9, %10 : vector<2x1024xi32>
    %c13_i32 = arith.constant 13 : i32
    %12 = vector.broadcast %c13_i32 : i32 to vector<2x1024xi32>
    %13 = arith.shrui %11, %12 : vector<2x1024xi32>
    %14 = arith.xori %11, %13 : vector<2x1024xi32>
    %c-1028477387_i32 = arith.constant -1028477387 : i32
    %15 = vector.broadcast %c-1028477387_i32 : i32 to vector<2x1024xi32>
    %16 = arith.muli %14, %15 : vector<2x1024xi32>
    %c16_i32_2 = arith.constant 16 : i32
    %17 = vector.broadcast %c16_i32_2 : i32 to vector<2x1024xi32>
    %18 = arith.shrui %16, %17 : vector<2x1024xi32>
    %19 = arith.xori %16, %18 : vector<2x1024xi32>
    %c429496730_i32 = arith.constant 429496730 : i32
    %20 = vector.broadcast %c429496730_i32 : i32 to vector<2x1024xi32>
    %21 = arith.cmpi uge, %19, %20 : vector<2x1024xi32>
    %c0_3 = arith.constant 0 : index
    %c0_4 = arith.constant 0 : index
    %22 = vector.load %arg3[%c0_3, %c0_4] : memref<2x1024xf32, #tpu.memory_space<vmem>>, vector<2x1024xf32>
    %cst = arith.constant 0.000000e+00 : f32
    %23 = vector.broadcast %cst : f32 to vector<2x1024xf32>
    %24 = arith.select %21, %22, %23 : vector<2x1024xi1>, vector<2x1024xf32>
    %c0_5 = arith.constant 0 : index
    %c0_6 = arith.constant 0 : index
    %25 = vector.load %arg4[%c0_5, %c0_6] : memref<2x1024xf32, #tpu.memory_space<vmem>>, vector<2x1024xf32>
    tpu.vector_store %arg4[%c0_5, %c0_6], %24 {strides = array<i32>} : memref<2x1024xf32, #tpu.memory_space<vmem>>, vector<2x1024xf32>,
    return
  }
  func.func @transform_0(%arg0: i32, %arg1: memref<1xi32, #tpu.memory_space<smem>>) -> (i32, i32) {
    %c0_i32 = arith.constant 0 : i32
    %c0_i32_0 = arith.constant 0 : i32
    %c0_i32_1 = arith.constant 0 : i32
    return %c0_i32, %c0_i32_0 : i32, i32
  }
  func.func @transform_1(%arg0: i32, %arg1: memref<1xi32, #tpu.memory_space<smem>>) -> (i32, i32) {
    %c0_i32 = arith.constant 0 : i32
    %c0_i32_0 = arith.constant 0 : i32
    return %arg0, %c0_i32 : i32, i32
  }
  func.func @transform_2(%arg0: i32, %arg1: memref<1xi32, #tpu.memory_space<smem>>) -> (i32, i32) {
    %c0_i32 = arith.constant 0 : i32
    %c0_i32_0 = arith.constant 0 : i32
    return %arg0, %c0_i32 : i32, i32
  }
}

</mosaic_0001>

<llo_original>
// kernel: tpu_custom_call.1
$region0: #{tpu_custom_call.1}
  #allocation0 [shape = 'u32[]', space=smem, size = 0x4, offset = 0x4, fixed_abs, tag = 'smem constant byte address 0x4 - core index']
  #allocation1 [shape = 'u32[144,128]{1,0:T(1,128)}', space=vmem, size = 0x12000, scoped, tag = 'internal scratch']
  #allocation2 [shape = 's32[1]{0}', space=sflag, size = 0x4, scoped, tag = 'scoped memory for tpu_custom_call.1']
  #allocation3 [shape = 's32[1]{0:T(128)S(6)}', space=smem, size = 0x200, scoped, tag = 'prefetched SMEM operand 0']
  %s0 = inlined_call_operand.<no memory space> [shape: s32[1], index: 0, kind: input, shape index: {}]
  %s1 = inlined_call_operand.hbm [shape: u32[2,1024], index: 1, kind: input, shape index: {}]
  %s2 = inlined_call_operand.hbm [shape: f32[2,1024], index: 2, kind: input, shape index: {}]
  %s3 = inlined_call_operand.hbm [shape: f32[2,1024], index: 3, kind: output, shape index: {}]
  %s4 = sld [smem:[#allocation0]]
  $region26: #{tpu_custom_call.1} parent=0
    _
  %s6 = ssub.s32 1, %s4
  %s7 = scalar_select 0, %s6, %s4
  %8 = sst [smem:[#allocation3]] %s0
  $region1: #{tpu_custom_call.1} parent=0
    #allocation4 [shape = 'u8[8192]{0}', space=vmem, size = 0x2000, scoped, tag = 'input window, operand 1, single buffered']
    #allocation5 [shape = 's32[1]{0}', space=sflag, size = 0x4, scoped, tag = 'scoped memory for tpu_custom_call.1']
    #allocation6 [shape = 's32[1]{0}', space=sflag, size = 0x4, scoped, tag = 'scoped memory for tpu_custom_call.1']
    #allocation7 [shape = 'u8[8192]{0}', space=vmem, size = 0x2000, scoped, tag = 'input window, operand 2, single buffered']
    #allocation8 [shape = 's32[1]{0}', space=sflag, size = 0x4, scoped, tag = 'scoped memory for tpu_custom_call.1']
    #allocation9 [shape = 'u8[8192]{0}', space=vmem, size = 0x2000, scoped, tag = 'output window, operand 0, single buffered']
    %9 = vsyncpa [#allocation5], 0
    %10 = vsyncpa [#allocation8], 0
    %11 = vsyncpa [#allocation6], 0
    // Predicated region
    $region2: #{tpu_custom_call.1} parent=1 // pred_check
      _
    $region3: #{tpu_custom_call.1} parent=1 // pred_check_branch
      %13 = sbr.rel (0) target = $region5
    $region4: #{tpu_custom_call.1} parent=1 // pred_region
      %s15 = ssub.s32 256, 256
      %16 = vsyncadd [#allocation5], %s15
      %s18 = sshll.u32 [#allocation4], 4
      %s19 = int_to_ptr.vmem [resolvable:$true] %s18
      %21 = dma.hbm_to_vmem [thread:$0]  %s1, 256, %s19, [#allocation5]
    $region5: #{tpu_custom_call.1} parent=1 // pred_fallthru
      _
    // Predicated region
    $region6: #{tpu_custom_call.1} parent=1 // pred_check
      _
    $region7: #{tpu_custom_call.1} parent=1 // pred_check_branch
      %23 = sbr.rel (0) target = $region9
    $region8: #{tpu_custom_call.1} parent=1 // pred_region
      %s25 = ssub.s32 256, 256
      %26 = vsyncadd [#allocation8], %s25
      %s28 = sshll.u32 [#allocation7], 4
      %s29 = int_to_ptr.vmem [resolvable:$true] %s28
      %31 = dma.hbm_to_vmem [thread:$0]  %s2, 256, %s29, [#allocation8]
    $region9: #{tpu_custom_call.1} parent=1 // pred_fallthru
      _
    // Predicated region
    $region10: #{tpu_custom_call.1} parent=1 // pred_check
      _
    $region11: #{tpu_custom_call.1} parent=1 // pred_check_branch
      %33 = sbr.rel (0) target = $region13
    $region12: #{tpu_custom_call.1} parent=1 // pred_region
      %34 = dma.done [#allocation5], 256
    $region13: #{tpu_custom_call.1} parent=1 // pred_fallthru
      _
    // Predicated region
    $region14: #{tpu_custom_call.1} parent=1 // pred_check
      _
    $region15: #{tpu_custom_call.1} parent=1 // pred_check_branch
      %36 = sbr.rel (0) target = $region17
    $region16: #{tpu_custom_call.1} parent=1 // pred_region
      %37 = dma.done [#allocation8], 256
    $region17: #{tpu_custom_call.1} parent=1 // pred_fallthru
      _
    %s38 = smul.u32 0, 3150809088
    %s39 = sld [smem:[#allocation3]]
    %s40 = sadd.s32 %s38, %s39
    %v41 = vld [vmem:[#allocation4] sm:$0xff]
    %v42 = vld [vmem:[#allocation4 + $0x8] sm:$0xff]
    %v43 = vstv %s40
    %v44 = vadd.s32 %v41, %v43
    %v45 = vadd.s32 %v42, %v43
    %v46 = vshrl.u32 %v44, 16
    %v47 = vshrl.u32 %v45, 16
    %v48 = vxor.u32 %v44, %v46
    %v49 = vxor.u32 %v45, %v47
    %v50 = vmul.u32 %v48, 2246822507
    %v51 = vmul.u32 %v49, 2246822507
    %v52 = vshrl.u32 %v50, 13
    %v53 = vshrl.u32 %v51, 13
    %v54 = vxor.u32 %v50, %v52
    %v55 = vxor.u32 %v51, %v53
    %v56 = vmul.u32 %v54, 3266489909
    %v57 = vmul.u32 %v55, 3266489909
    %v58 = vshrl.u32 %v56, 16
    %v59 = vshrl.u32 %v57, 16
    %v60 = vxor.u32 %v56, %v58
    %v61 = vxor.u32 %v57, %v59
    %vm62 = vcmp.ge.u32.totalorder %v60, 429496730
    %vm63 = vcmp.ge.u32.totalorder %v61, 429496730
    %v64 = vld [vmem:[#allocation7] sm:$0xff]
    %v65 = vld [vmem:[#allocation7 + $0x8] sm:$0xff]
    %v66 = vsel %vm62, %v64, 0.0
    %v67 = vsel %vm63, %v65, 0.0
    %68 = vst [vmem:[#allocation9] sm:$0xff] %v66
    %69 = vst [vmem:[#allocation9 + $0x8] sm:$0xff] %v67
    // Predicated region
    $region18: #{tpu_custom_call.1} parent=1 // pred_check
      _
    $region19: #{tpu_custom_call.1} parent=1 // pred_check_branch
      %71 = sbr.rel (0) target = $region21
    $region20: #{tpu_custom_call.1} parent=1 // pred_region
      %s73 = ssub.s32 256, 256
      %74 = vsyncadd [#allocation6], %s73
      %s76 = sshll.u32 [#allocation9], 4
      %s77 = int_to_ptr.vmem [resolvable:$true] %s76
      %79 = dma.vmem_to_hbm [thread:$0]  %s77, 256, %s3, [#allocation6]
    $region21: #{tpu_custom_call.1} parent=1 // pred_fallthru
      _
    // Predicated region
    $region22: #{tpu_custom_call.1} parent=1 // pred_check
      _
    $region23: #{tpu_custom_call.1} parent=1 // pred_check_branch
      %81 = sbr.rel (0) target = $region25
    $region24: #{tpu_custom_call.1} parent=1 // pred_region
      %82 = dma.done [#allocation6], 256
    $region25: #{tpu_custom_call.1} parent=1 // pred_fallthru
      _
    %83 = vsyncpa [#allocation5], 1
    %84 = vsyncpa [#allocation8], 1
    %85 = vsyncpa [#allocation6], 1

</llo_original>
